<compile_context>
chip_gen: v7x
topology: tpu7x:2x2x1
jax: 0.10.0
libtpu: 0.0.40
codegen_flags: <defaults>
</compile_context>

<pallas_src>
import numpy as np

import jax
import jax.numpy as jnp
from jax.experimental import pallas as pl
from jax.experimental.pallas import tpu as pltpu


def _round_up(n, m):
    return -(-n // m) * m


def _expand_kernel(tab_ref, oh_ref, o_ref):
    """One (F, tL) output block = padded-table-half @ one-hot expansion tile.

    tab_ref: (F, K)   zero-padded table for this channel half
                      (col_embed[:W].T for half 0, row_embed[:H].T for half 1)
    oh_ref:  (K, tL)  0/1 expansion tile: column s has a single 1 in the table
                      row this spatial position broadcasts from.
    o_ref:   (F, tL)  output block -> (batch b, channels [c*F, (c+1)*F), lane tile t)
    """
    o_ref[...] = jnp.dot(
        tab_ref[...],
        oh_ref[...],
        precision=jax.lax.Precision.HIGHEST,   # exact: one-hot picks a single f32
        preferred_element_type=jnp.float32,
    ).astype(o_ref.dtype)


def position_embedding_learned(row_embed_weight, col_embed_weight, x,
                               out_dtype=None):
    """Forward of PositionEmbeddingLearned.

    row_embed_weight: (256, F) embedding table (indexed by H / row / y)
    col_embed_weight: (256, F) embedding table (indexed by W / col / x)
    x:                (B, C, H, W) feature map (only its shape is used)
    returns:          (B, 2F, H, W) positional embedding (same for every b).
    """
    b = int(x.shape[0])
    h, w = int(x.shape[-2]), int(x.shape[-1])
    feat = int(row_embed_weight.shape[-1])
    if out_dtype is None:
        out_dtype = row_embed_weight.dtype
    assert feat % 8 == 0, "num_pos_feats must be a multiple of 8"

    hw = h * w
    dt = jnp.float32  # compute dtype for the exact one-hot expansion matmul

    # ---- tiny wrapper-side prep (O((H+W)*(F + H*W)) elements, i.e. F-times and
    #      B-times smaller than the output) -----------------------------------
    # arange(h)/arange(w) embedding lookups are contiguous static slices;
    # transpose the tiny tables to channels-first (channels -> sublanes).
    col_t = jax.lax.slice(col_embed_weight, (0, 0), (w, feat)).astype(dt).T  # (F, W)
    row_t = jax.lax.slice(row_embed_weight, (0, 0), (h, feat)).astype(dt).T  # (F, H)

    # Zero-pad both index axes to a common K (multiple of 8) and stack so one
    # BlockSpec index_map selects the channel half per grid step.
    k = max(_round_up(h, 8), _round_up(w, 8))
    col_p = jnp.zeros((feat, k), dt).at[:, :w].set(col_t)
    row_p = jnp.zeros((feat, k), dt).at[:, :h].set(row_t)
    tabs = jnp.stack([col_p, row_p])                      # (2, F, K)

    # Structure-only 0/1 expansion matrices (no embedding values):
    #   oh_x[r, s] = 1  iff  s %  W == r   -> broadcasts col_embed over H
    #   oh_y[r, s] = 1  iff  s // W == r   -> broadcasts row_embed over W
    lane = jnp.arange(hw, dtype=jnp.int32)
    kidx = jnp.arange(k, dtype=jnp.int32)
    oh_x = (lane[None, :] % w) == kidx[:, None]
    oh_y = (lane[None, :] // w) == kidx[:, None]
    onehots = jnp.stack([oh_x, oh_y]).astype(dt)          # (2, K, H*W)

    # ---- lane-tile selection --------------------------------------------------
    itemsize = np.dtype(out_dtype).itemsize
    block_budget = 2 << 20   # ~2 MiB per output buffer; ~4 MiB double-buffered,
                             # well under v5e/v6e/v7x scoped-VMEM defaults.
    if hw <= 128 or feat * hw * itemsize <= block_budget:
        tl = hw              # single lane tile covering the whole flattened image
    else:
        # lane tiles must be multiples of 128 (or the full extent)
        tl = max(128, (block_budget // (feat * itemsize)) // 128 * 128)
    n_t = pl.cdiv(hw, tl)    # Pallas masks the ragged last tile

    pos_flat = pl.pallas_call(
        _expand_kernel,
        out_shape=jax.ShapeDtypeStruct((b, 2 * feat, hw), out_dtype),
        grid=(2, n_t, b),
        in_specs=[
            # (None, ...) squeezes the stacking axis; index_map picks the half.
            pl.BlockSpec((None, feat, k), lambda c, t, bi: (c, 0, 0)),
            pl.BlockSpec((None, k, tl), lambda c, t, bi: (c, 0, t)),
        ],
        out_specs=pl.BlockSpec((None, feat, tl), lambda c, t, bi: (bi, c, t)),
        compiler_params=pltpu.CompilerParams(
            dimension_semantics=("parallel", "parallel", "parallel")),
    )(tabs, onehots)

    # Row-major (B, 2F, H*W) -> (B, 2F, H, W) is a metadata-only reshape.
    return pos_flat.reshape(b, 2 * feat, h, w)


def _reference(row_embed_weight, col_embed_weight, x):
    """Pure-JAX reference mirroring the PyTorch forward exactly."""
    b = x.shape[0]
    h, w = x.shape[-2], x.shape[-1]
    feat = row_embed_weight.shape[-1]
    x_emb = col_embed_weight[:w]            # col_embed(arange(w)) -> (W, F)
    y_emb = row_embed_weight[:h]            # row_embed(arange(h)) -> (H, F)
    pos = jnp.concatenate(
        [jnp.broadcast_to(x_emb[None, :, :], (h, w, feat)),
         jnp.broadcast_to(y_emb[:, None, :], (h, w, feat))],
        axis=-1)                            # (H, W, 2F)
    pos = jnp.transpose(pos, (2, 0, 1))     # (2F, H, W)
    return jnp.broadcast_to(pos[None], (b, 2 * feat, h, w))


if __name__ == "__main__":
    key = jax.random.PRNGKey(0)
    k_row, k_col, k_x = jax.random.split(key, 3)

    num_pos_feats = 32
    B, C, H, W = 2, 4, 16, 16

    # nn.Embedding(256, num_pos_feats) weights with uniform_ init.
    row_tab = jax.random.uniform(k_row, (256, num_pos_feats), dtype=jnp.float32)
    col_tab = jax.random.uniform(k_col, (256, num_pos_feats), dtype=jnp.float32)
    x = jax.random.normal(k_x, (B, C, H, W), dtype=jnp.float32)

    fwd = jax.jit(position_embedding_learned)
    pos = jax.block_until_ready(fwd(row_tab, col_tab, x))

    ref = _reference(row_tab, col_tab, x)
    assert pos.shape == (B, 2 * num_pos_feats, H, W), pos.shape
    np.testing.assert_allclose(np.asarray(pos), np.asarray(ref), rtol=0, atol=1e-6)

    print("KERNEL_OK")
</pallas_src>

<mosaic_0001>
module attributes {stable_mosaic.version = 11 : i64} {
  func.func @_expand_kernel(%arg0: i32, %arg1: i32, %arg2: i32, %arg3: memref<1x32x16xf32, #tpu.memory_space<vmem>>, %arg4: memref<1x16x256xf32, #tpu.memory_space<vmem>>, %arg5: memref<1x32x256xf32, #tpu.memory_space<vmem>>) attributes {dimension_semantics = [#tpu.dimension_semantics<parallel>, #tpu.dimension_semantics<parallel>, #tpu.dimension_semantics<parallel>], iteration_bounds = array<i64: 2, 1, 2>, scalar_prefetch = 0 : i64, scratch_operands = 0 : i64, tpu.core_type = #tpu.core_type<tc>, window_params = [{transform_indices = @transform_0, window_bounds = array<i64: 1, 32, 16>}, {transform_indices = @transform_1, window_bounds = array<i64: 1, 16, 256>}, {transform_indices = @transform_2, window_bounds = array<i64: 1, 32, 256>}]} {
    %c0 = arith.constant 0 : index
    %c0_0 = arith.constant 0 : index
    %c0_1 = arith.constant 0 : index
    %0 = vector.load %arg3[%c0, %c0_0, %c0_1] : memref<1x32x16xf32, #tpu.memory_space<vmem>>, vector<1x32x16xf32>
    %1 = vector.shape_cast %0 : vector<1x32x16xf32> to vector<32x16xf32>
    %c0_2 = arith.constant 0 : index
    %c0_3 = arith.constant 0 : index
    %c0_4 = arith.constant 0 : index
    %2 = vector.load %arg4[%c0_2, %c0_3, %c0_4] : memref<1x16x256xf32, #tpu.memory_space<vmem>>, vector<1x16x256xf32>
    %3 = vector.shape_cast %2 : vector<1x16x256xf32> to vector<16x256xf32>
    %cst = arith.constant dense<0.000000e+00> : vector<32x256xf32>
    %4 = tpu.matmul %1, %3, %cst {dimension_numbers = #tpu.dot_dimension_numbers<[1], [0], [0], [1], [0, 0, 1, 1], [], []>, precision = #tpu.contract_precision<fp32>} : vector<32x16xf32>, vector<16x256xf32>, vector<32x256xf32> -> vector<32x256xf32>
    %c0_5 = arith.constant 0 : index
    %c0_6 = arith.constant 0 : index
    %c0_7 = arith.constant 0 : index
    %5 = vector.load %arg5[%c0_5, %c0_6, %c0_7] : memref<1x32x256xf32, #tpu.memory_space<vmem>>, vector<1x32x256xf32>
    %6 = vector.shape_cast %5 : vector<1x32x256xf32> to vector<32x256xf32>
    %7 = vector.shape_cast %4 : vector<32x256xf32> to vector<1x32x256xf32>
    tpu.vector_store %arg5[%c0_5, %c0_6, %c0_7], %7 {strides = array<i32>} : memref<1x32x256xf32, #tpu.memory_space<vmem>>, vector<1x32x256xf32>,
    return
  }
  func.func @transform_0(%arg0: i32, %arg1: i32, %arg2: i32) -> (i32, i32, i32) {
    %c0_i32 = arith.constant 0 : i32
    %c0_i32_0 = arith.constant 0 : i32
    %c0_i32_1 = arith.constant 0 : i32
    return %arg0, %c0_i32, %c0_i32_0 : i32, i32, i32
  }
  func.func @transform_1(%arg0: i32, %arg1: i32, %arg2: i32) -> (i32, i32, i32) {
    %c0_i32 = arith.constant 0 : i32
    %c0_i32_0 = arith.constant 0 : i32
    return %arg0, %c0_i32, %arg1 : i32, i32, i32
  }
  func.func @transform_2(%arg0: i32, %arg1: i32, %arg2: i32) -> (i32, i32, i32) {
    %c0_i32 = arith.constant 0 : i32
    return %arg2, %arg0, %arg1 : i32, i32, i32
  }
}

</mosaic_0001>

<llo_original>
// kernel: position_embedding_learned.1
$region0: #{position_embedding_learned.1}
  #allocation0 [shape = 'u32[]', space=smem, size = 0x4, offset = 0x4, fixed_abs, tag = 'smem constant byte address 0x4 - core index']
  #allocation1 [shape = 'u32[144,128]{1,0:T(1,128)}', space=vmem, size = 0x12000, scoped, tag = 'internal scratch']
  %s0 = inlined_call_operand.vmem [shape: f32[2,32,16], index: 0, kind: input, shape index: {}]
  %s1 = inlined_call_operand.vmem [shape: f32[2,16,256], index: 1, kind: input, shape index: {}]
  %s2 = inlined_call_operand.vmem [shape: f32[2,64,256], index: 2, kind: output, shape index: {}]
  %s3 = sld [smem:[#allocation0]]
  $region41: #{position_embedding_learned.1} parent=0
    _
  %s5 = ssub.s32 1, %s3
  %s6 = scalar_select 0, %s5, %s3
  loop: start=0, step=1, limit=6
  $region2: #{position_embedding_learned.1} parent=0 // loop_pre_header
    _
  $region3: #{position_embedding_learned.1} parent=0 // loop_header
    %s8 = sphi 0, %s12
    %p9 = scmp.ge.s32.totalorder %s8, 6
    %s15 = sphi 0, %s34
    %s16 = sphi 0, %s30
    %s17 = sphi 0, %s26
    %s18 = sphi 0, %s15
    %s19 = sphi 0, %s16
    %s20 = sphi 0, %s17
    %s21 = sphi 0, %s18
    %s22 = sphi 0, %s19
    %s23 = sphi 0, %s20
    %s37 = sphi 0, %s39
    %s40 = sphi 0, %s37
    %s41 = sphi 0, %s40
    %s57 = sphi 0, %s41
    %s65 = sphi 0, %s67
    %s68 = sphi 0, %s65
    %s69 = sphi 0, %s68
    %s85 = sphi 0, %s69
    %s95 = sphi 0, %s97
    %s98 = sphi 0, %s95
    %s99 = sphi 0, %s98
    %s115 = sphi 0, %s99
  $region4: #{position_embedding_learned.1} parent=0 // loop_header_branch
    %11 = sbr.rel (%p9) target = $region8
  $region5: #{position_embedding_learned.1} parent=0 // loop_body
    %s13 = ssub.s32 %s8, 1
    %s14 = ssub.s32 %s8, 2
    %s24 = sadd.s32 1, %s17
    %p25 = scmp.ge.s32.totalorder %s24, 2
    %s26 = scalar_select %p25, 0, %s24
    %s27 = sadd.s32 1, %s16
    %s28 = scalar_select %p25, %s27, %s16
    %p29 = scmp.ge.s32.totalorder %s28, 1
    %s30 = scalar_select %p29, 0, %s28
    %s31 = sadd.s32 1, %s15
    %s32 = scalar_select %p29, %s31, %s15
    %p33 = scmp.ge.s32.totalorder %s32, 2
    %s34 = scalar_select %p33, 0, %s32
    %s35 = ssub.s32 %s15, %s34
    %p36 = scmp.eq.s32.totalorder %s35, 0
    %s38 = sadd.s32 %s37, 1
    %s39 = scalar_select %p36, %s37, %s38
    %p42 = pneg %p36
    %p43 = scmp.eq.s32.totalorder %s8, 3
    %p44 = por %p42, %p43
    %p45 = scmp.ne.s32.totalorder %s37, %s40
    %p46 = scmp.eq.s32.totalorder %s8, 0
    %p47 = por %p45, %p46
    %p48 = scmp.ne.s32.totalorder %s37, %s40
    %p49 = scmp.eq.s32.totalorder %s13, 3
    %p50 = por %p48, %p49
    %p51 = scmp.ne.s32.totalorder %s40, %s41
    %p52 = scmp.eq.s32.totalorder %s13, 0
    %p53 = por %p51, %p52
    %p54 = scmp.ne.s32.totalorder %s40, %s41
    %p55 = scmp.eq.s32.totalorder %s14, 3
    %p56 = por %p54, %p55
    %p58 = scmp.ne.s32.totalorder %s41, %s57
    %p59 = scmp.eq.s32.totalorder %s14, 0
    %p60 = por %p58, %p59
    %s61 = ssub.s32 %s15, %s34
    %s62 = ssub.s32 %s16, %s30
    %s63 = sor.u32 %s61, %s62
    %p64 = scmp.eq.s32.totalorder %s63, 0
    %s66 = sadd.s32 %s65, 1
    %s67 = scalar_select %p64, %s65, %s66
    %p70 = pneg %p64
    %p71 = scmp.eq.s32.totalorder %s8, 3
    %p72 = por %p70, %p71
    %p73 = scmp.ne.s32.totalorder %s65, %s68
    %p74 = scmp.eq.s32.totalorder %s8, 0
    %p75 = por %p73, %p74
    %p76 = scmp.ne.s32.totalorder %s65, %s68
    %p77 = scmp.eq.s32.totalorder %s13, 3
    %p78 = por %p76, %p77
    %p79 = scmp.ne.s32.totalorder %s68, %s69
    %p80 = scmp.eq.s32.totalorder %s13, 0
    %p81 = por %p79, %p80
    %p82 = scmp.ne.s32.totalorder %s68, %s69
    %p83 = scmp.eq.s32.totalorder %s14, 3
    %p84 = por %p82, %p83
    %p86 = scmp.ne.s32.totalorder %s69, %s85
    %p87 = scmp.eq.s32.totalorder %s14, 0
    %p88 = por %p86, %p87
    %s89 = ssub.s32 %s17, %s26
    %s90 = ssub.s32 %s15, %s34
    %s91 = sor.u32 %s89, %s90
    %s92 = ssub.s32 %s16, %s30
    %s93 = sor.u32 %s91, %s92
    %p94 = scmp.eq.s32.totalorder %s93, 0
    %s96 = sadd.s32 %s95, 1
    %s97 = scalar_select %p94, %s95, %s96
    %p100 = pneg %p94
    %p101 = scmp.eq.s32.totalorder %s8, 3
    %p102 = por %p100, %p101
    %p103 = scmp.ne.s32.totalorder %s95, %s98
    %p104 = scmp.eq.s32.totalorder %s8, 0
    %p105 = por %p103, %p104
    %p106 = scmp.ne.s32.totalorder %s95, %s98
    %p107 = scmp.eq.s32.totalorder %s13, 3
    %p108 = por %p106, %p107
    %p109 = scmp.ne.s32.totalorder %s98, %s99
    %p110 = scmp.eq.s32.totalorder %s13, 0
    %p111 = por %p109, %p110
    %p112 = scmp.ne.s32.totalorder %s98, %s99
    %p113 = scmp.eq.s32.totalorder %s14, 3
    %p114 = por %p112, %p113
    %p116 = scmp.ne.s32.totalorder %s99, %s115
    %p117 = scmp.eq.s32.totalorder %s14, 0
    %p118 = por %p116, %p117
    %p119 = scmp.le.s32.totalorder 1, %s8
    %p120 = scmp.lt.s32.totalorder %s8, 5
    %p121 = pnand %p119, %p120
    %p122 = pneg %p121
    // Predicated region
    $region9: #{position_embedding_learned.1} parent=5 // pred_check
      _
    $region10: #{position_embedding_learned.1} parent=5 // pred_check_branch
      %124 = sbr.rel (%p121) target = $region12
    $region11: #{position_embedding_learned.1} parent=5 // pred_region
      %s125 = ssub.s32 %s8, 1
    $region12: #{position_embedding_learned.1} parent=5 // pred_fallthru
      _
    %p126 = scmp.lt.s32.totalorder %s8, 4
    // Predicated region
    $region13: #{position_embedding_learned.1} parent=5 // pred_check
      %p127 = pneg %p126
    $region14: #{position_embedding_learned.1} parent=5 // pred_check_branch
      %129 = sbr.rel (%p127) target = $region16
    $region15: #{position_embedding_learned.1} parent=5 // pred_region
      // Predicated region
      $region17: #{position_embedding_learned.1} parent=15 // pred_check
        %p130 = pneg %p47
      $region18: #{position_embedding_learned.1} parent=15 // pred_check_branch
        %132 = sbr.rel (%p130) target = $region20
      $region19: #{position_embedding_learned.1} parent=15 // pred_region
        %p133 = scmp.lt.s32.totalorder %s15, 1
        %s134 = scalar_select %p133, %s15, 1
        %s135 = smul.addr %s134, 4
        %s136 = smul.addr %s135, 8
        %s137 = scalar_lea.vmem %s0, %s136
      $region20: #{position_embedding_learned.1} parent=15 // pred_fallthru
        _
      // Predicated region
      $region21: #{position_embedding_learned.1} parent=15 // pred_check
        %p138 = pneg %p75
      $region22: #{position_embedding_learned.1} parent=15 // pred_check_branch
        %140 = sbr.rel (%p138) target = $region24
      $region23: #{position_embedding_learned.1} parent=15 // pred_region
        %s141 = smul.u32 2, %s16
        %p142 = scmp.lt.s32.totalorder %s15, 1
        %s143 = scalar_select %p142, %s15, 1
        %p144 = scmp.lt.s32.totalorder %s141, 1
        %s145 = scalar_select %p144, %s141, 1
        %s146 = smul.addr %s143, 4
        %s147 = sadd.s32 %s145, %s146
        %s148 = smul.addr %s147, 8
        %s149 = scalar_lea.vmem %s1, %s148
        %s150 = smul.u32 2, %s16
      $region24: #{position_embedding_learned.1} parent=15 // pred_fallthru
        _
    $region16: #{position_embedding_learned.1} parent=5 // pred_fallthru
      _
    %p151 = scmp.le.s32.totalorder 1, %s8
    %p152 = scmp.lt.s32.totalorder %s8, 5
    %p153 = pnand %p151, %p152
    %p154 = pneg %p153
    // Predicated region
    $region25: #{position_embedding_learned.1} parent=5 // pred_check
      _
    $region26: #{position_embedding_learned.1} parent=5 // pred_check_branch
      %156 = sbr.rel (%p153) target = $region28
    $region27: #{position_embedding_learned.1} parent=5 // pred_region
      %s157 = ssub.s32 %s8, 1
      %p158 = scmp.lt.s32.totalorder %s18, 1
      %s159 = scalar_select %p158, %s18, 1
      %s160 = smul.addr %s159, 4
      %s161 = smul.addr %s160, 8
      %s162 = scalar_lea.vmem %s0, %s161
      %p163 = pneg %p53
      %p164 = pneg %p50
      %s165 = smul.u32 2, %s19
      %p166 = scmp.lt.s32.totalorder %s18, 1
      %s167 = scalar_select %p166, %s18, 1
      %p168 = scmp.lt.s32.totalorder %s165, 1
      %s169 = scalar_select %p168, %s165, 1
      %s170 = smul.addr %s167, 4
      %s171 = sadd.s32 %s169, %s170
      %s172 = smul.addr %s171, 8
      %s173 = scalar_lea.vmem %s1, %s172
      %p174 = pneg %p81
      %p175 = pneg %p78
      %p176 = pneg %p111
      %p177 = pneg %p108
      %s178 = smul.u32 4, %s18
      %s179 = smul.u32 2, %s19
      %p180 = scmp.lt.s32.totalorder %s20, 1
      %s181 = scalar_select %p180, %s20, 1
      %p182 = scmp.lt.s32.totalorder %s178, 7
      %s183 = scalar_select %p182, %s178, 7
      %p184 = scmp.lt.s32.totalorder %s179, 1
      %s185 = scalar_select %p184, %s179, 1
      %s186 = smul.addr %s183, 2
      %s187 = sadd.s32 %s185, %s186
      %s188 = smul.addr %s181, 16
      %s189 = sadd.s32 %s187, %s188
      %s190 = smul.addr %s189, 8
      %s191 = scalar_lea.vmem %s2, %s190
      %p192 = scmp.lt.s32.totalorder %s18, 1
      %s193 = scalar_select %p192, %s18, 1
      %s194 = smul.addr %s193, 4
      %s195 = smul.addr %s194, 8
      %s196 = scalar_lea.vmem %s0, %s195
      %s197 = smul.u32 2, %s19
      %p198 = scmp.lt.s32.totalorder %s18, 1
      %s199 = scalar_select %p198, %s18, 1
      %p200 = scmp.lt.s32.totalorder %s197, 1
      %s201 = scalar_select %p200, %s197, 1
      %s202 = smul.addr %s199, 4
      %s203 = sadd.s32 %s201, %s202
      %s204 = smul.addr %s203, 8
      %s205 = scalar_lea.vmem %s1, %s204
      %s206 = smul.u32 2, %s19
      %s207 = smul.u32 4, %s18
      %s208 = smul.u32 2, %s19
      %p209 = scmp.lt.s32.totalorder %s20, 1
      %s210 = scalar_select %p209, %s20, 1
      %p211 = scmp.lt.s32.totalorder %s207, 7
      %s212 = scalar_select %p211, %s207, 7
      %p213 = scmp.lt.s32.totalorder %s208, 1
      %s214 = scalar_select %p213, %s208, 1
      %s215 = smul.addr %s212, 2
      %s216 = sadd.s32 %s214, %s215
      %s217 = smul.addr %s210, 16
      %s218 = sadd.s32 %s216, %s217
      %s219 = smul.addr %s218, 8
      %s220 = scalar_lea.vmem %s2, %s219
      %s221 = smul.u32 4, %s18
      %s222 = smul.u32 2, %s19
      %v223 = vld [vmem:[%s196] sm:$0xff]
      %v224 = vld [vmem:[%s196 + $0x8] sm:$0xff]
      %v225 = vld [vmem:[%s196 + $0x10] sm:$0xff]
      %v226 = vld [vmem:[%s196 + $0x18] sm:$0xff]
      %v227 = vld [vmem:[%s205] sm:$0xff]
      %v228 = vld [vmem:[%s205 + $0x8] sm:$0xff]
      %v229 = vld [vmem:[%s205 + $0x10] sm:$0xff]
      %v230 = vld [vmem:[%s205 + $0x18] sm:$0xff]
      %vm231 = vcmask 130048
      %v233 = vsel %vm231, %v223, 0
      %v236 = vsel %vm231, %v224, 0
      %v239 = vsel %vm231, %v225, 0
      %v242 = vsel %vm231, %v226, 0
      %v244 = vand.u32 %v228, 4294901760
      %245 = vmatprep.subr.mxu0 %v244
      %v246 = vand.u32 %v227, 4294901760
      %247 = vmatpush1.msra.mxu0 %v246
      %v248 = vand.u32 %v230, 4294901760
      %249 = vmatprep.subr.mxu0 %v248
      %v250 = vand.u32 %v229, 4294901760
      %251 = vmatpush1.msra.mxu0 %v250
      %252 = vmatprep.subr.mxu0 0.0
      %253 = vmatpush1.msra.mxu0 0.0
      %254 = vmatprep.subr.mxu0 0.0
      %255 = vmatpush1.msra.mxu0 0.0
      %256 = vmatprep.subr.mxu0 0.0
      %257 = vmatpush1.msra.mxu0 0.0
      %258 = vmatprep.subr.mxu0 0.0
      %259 = vmatpush1.msra.mxu0 0.0
      %260 = vmatprep.subr.mxu0 0.0
      %261 = vmatpush1.msra.mxu0 0.0
      %262 = vmatprep.subr.mxu0 0.0
      %263 = vmatpush1.msra.mxu0 0.0
      %264 = vmatprep.subr.mxu0 0.0
      %265 = vmatpush1.msra.mxu0 0.0
      %266 = vmatprep.subr.mxu0 0.0
      %267 = vmatpush1.msra.mxu0 0.0
      %268 = vmatprep.subr.mxu0 0.0
      %269 = vmatpush1.msra.mxu0 0.0
      %270 = vmatprep.subr.mxu0 0.0
      %271 = vmatpush1.msra.mxu0 0.0
      %272 = vmatprep.subr.mxu0 0.0
      %273 = vmatpush1.msra.mxu0 0.0
      %274 = vmatprep.subr.mxu0 0.0
      %275 = vmatpush1.msra.mxu0 0.0
      %276 = vmatprep.subr.mxu0 0.0
      %277 = vmatpush1.msra.mxu0 0.0
      %278 = vmatprep.subr.mxu0 0.0
      %279 = vmatpush1.msra.mxu0 0.0
      %280 = vmatprep.subr.mxu0 0.0
      %281 = vmatpush1.msra.mxu0 0.0
      %282 = vmatprep.subr.mxu0 0.0
      %283 = vmatpush1.msra.mxu0 0.0
      %284 = vmatprep.subr.mxu0 0.0
      %285 = vmatpush1.msra.mxu0 0.0
      %286 = vmatprep.subr.mxu0 0.0
      %287 = vmatpush1.msra.mxu0 0.0
      %288 = vmatprep.subr.mxu0 0.0
      %289 = vmatpush1.msra.mxu0 0.0
      %290 = vmatprep.subr.mxu0 0.0
      %291 = vmatpush1.msra.mxu0 0.0
      %292 = vmatprep.subr.mxu0 0.0
      %293 = vmatpush1.msra.mxu0 0.0
      %294 = vmatprep.subr.mxu0 0.0
      %295 = vmatpush1.msra.mxu0 0.0
      %296 = vmatprep.subr.mxu0 0.0
      %297 = vmatpush1.msra.mxu0 0.0
      %298 = vmatprep.subr.mxu0 0.0
      %299 = vmatpush1.msra.mxu0 0.0
      %300 = vmatprep.subr.mxu0 0.0
      %301 = vmatpush1.msra.mxu0 0.0
      %302 = vmatprep.subr.mxu0 0.0
      %303 = vmatpush1.msra.mxu0 0.0
      %304 = vmatprep.subr.mxu0 0.0
      %305 = vmatpush1.msra.mxu0 0.0
      %306 = vmatprep.subr.mxu0 0.0
      %307 = vmatpush1.msra.mxu0 0.0
      %308 = vmatprep.subr.mxu0 0.0
      %309 = vmatpush1.msra.mxu0 0.0
      %310 = vmatprep.subr.mxu0 0.0
      %311 = vmatpush1.msra.mxu0 0.0
      %312 = vmatprep.mubr.f32.mxu0 0.0
      %v313 = vand.u32 %v233, 4294901760
      %v314 = vsub.f32 %v233, %v313
      %v315 = vand.u32 %v314, 4294901760
      %v316 = vsub.f32 %v314, %v315
      %v317 = vand.u32 %v316, 4294901760
      %318 = vmatmul.mubr.f32.gmra.mrb[0].mxu0 %v317
      %v319 = vpop.f32.mrb[0].mxu0
      %v320 = vadd.f32 0.0, %v319
      %v321 = vpop.f32.mrb[0].mxu0
      %v322 = vadd.f32 0.0, %v321
      %323 = vmatprep.mubr.f32.mxu0 0.0
      %v324 = vand.u32 %v236, 4294901760
      %v325 = vsub.f32 %v236, %v324
      %v326 = vand.u32 %v325, 4294901760
      %v327 = vsub.f32 %v325, %v326
      %v328 = vand.u32 %v327, 4294901760
      %329 = vmatmul.mubr.f32.gmra.mrb[0].mxu0 %v328
      %v330 = vpop.f32.mrb[0].mxu0
      %v331 = vadd.f32 0.0, %v330
      %v332 = vpop.f32.mrb[0].mxu0
      %v333 = vadd.f32 0.0, %v332
      %334 = vmatprep.mubr.f32.mxu0 0.0
      %v335 = vand.u32 %v239, 4294901760
      %v336 = vsub.f32 %v239, %v335
      %v337 = vand.u32 %v336, 4294901760
      %v338 = vsub.f32 %v336, %v337
      %v339 = vand.u32 %v338, 4294901760
      %340 = vmatmul.mubr.f32.gmra.mrb[0].mxu0 %v339
      %v341 = vpop.f32.mrb[0].mxu0
      %v342 = vadd.f32 0.0, %v341
      %v343 = vpop.f32.mrb[0].mxu0
      %v344 = vadd.f32 0.0, %v343
      %345 = vmatprep.mubr.f32.mxu0 0.0
      %v346 = vand.u32 %v242, 4294901760
      %v347 = vsub.f32 %v242, %v346
      %v348 = vand.u32 %v347, 4294901760
      %v349 = vsub.f32 %v347, %v348
      %v350 = vand.u32 %v349, 4294901760
      %351 = vmatmul.mubr.f32.gmra.mrb[0].mxu0 %v350
      %v352 = vpop.f32.mrb[0].mxu0
      %v353 = vadd.f32 0.0, %v352
      %v354 = vpop.f32.mrb[0].mxu0
      %v355 = vadd.f32 0.0, %v354
      %356 = vdwg.mxu0
      %v357 = vand.u32 %v228, 4294901760
      %v358 = vsub.f32 %v228, %v357
      %v359 = vand.u32 %v358, 4294901760
      %v360 = vsub.f32 %v358, %v359
      %v361 = vand.u32 %v360, 4294901760
      %362 = vmatprep.subr.mxu0 %v361
      %v363 = vand.u32 %v227, 4294901760
      %v364 = vsub.f32 %v227, %v363
      %v365 = vand.u32 %v364, 4294901760
      %v366 = vsub.f32 %v364, %v365
      %v367 = vand.u32 %v366, 4294901760
      %368 = vmatpush1.msra.mxu0 %v367
      %v369 = vand.u32 %v230, 4294901760
      %v370 = vsub.f32 %v230, %v369
      %v371 = vand.u32 %v370, 4294901760
      %v372 = vsub.f32 %v370, %v371
      %v373 = vand.u32 %v372, 4294901760
      %374 = vmatprep.subr.mxu0 %v373
      %v375 = vand.u32 %v229, 4294901760
      %v376 = vsub.f32 %v229, %v375
      %v377 = vand.u32 %v376, 4294901760
      %v378 = vsub.f32 %v376, %v377
      %v379 = vand.u32 %v378, 4294901760
      %380 = vmatpush1.msra.mxu0 %v379
      %381 = vmatprep.subr.mxu0 0.0
      %382 = vmatpush1.msra.mxu0 0.0
      %383 = vmatprep.subr.mxu0 0.0
      %384 = vmatpush1.msra.mxu0 0.0
      %385 = vmatprep.subr.mxu0 0.0
      %386 = vmatpush1.msra.mxu0 0.0
      %387 = vmatprep.subr.mxu0 0.0
      %388 = vmatpush1.msra.mxu0 0.0
      %389 = vmatprep.subr.mxu0 0.0
      %390 = vmatpush1.msra.mxu0 0.0
      %391 = vmatprep.subr.mxu0 0.0
      %392 = vmatpush1.msra.mxu0 0.0
      %393 = vmatprep.subr.mxu0 0.0
      %394 = vmatpush1.msra.mxu0 0.0
      %395 = vmatprep.subr.mxu0 0.0
      %396 = vmatpush1.msra.mxu0 0.0
      %397 = vmatprep.subr.mxu0 0.0
      %398 = vmatpush1.msra.mxu0 0.0
      %399 = vmatprep.subr.mxu0 0.0
      %400 = vmatpush1.msra.mxu0 0.0
      %401 = vmatprep.subr.mxu0 0.0
      %402 = vmatpush1.msra.mxu0 0.0
      %403 = vmatprep.subr.mxu0 0.0
      %404 = vmatpush1.msra.mxu0 0.0
      %405 = vmatprep.subr.mxu0 0.0
      %406 = vmatpush1.msra.mxu0 0.0
      %407 = vmatprep.subr.mxu0 0.0
      %408 = vmatpush1.msra.mxu0 0.0
      %409 = vmatprep.subr.mxu0 0.0
      %410 = vmatpush1.msra.mxu0 0.0
      %411 = vmatprep.subr.mxu0 0.0
      %412 = vmatpush1.msra.mxu0 0.0
      %413 = vmatprep.subr.mxu0 0.0
      %414 = vmatpush1.msra.mxu0 0.0
      %415 = vmatprep.subr.mxu0 0.0
      %416 = vmatpush1.msra.mxu0 0.0
      %417 = vmatprep.subr.mxu0 0.0
      %418 = vmatpush1.msra.mxu0 0.0
      %419 = vmatprep.subr.mxu0 0.0
      %420 = vmatpush1.msra.mxu0 0.0
      %421 = vmatprep.subr.mxu0 0.0
      %422 = vmatpush1.msra.mxu0 0.0
      %423 = vmatprep.subr.mxu0 0.0
      %424 = vmatpush1.msra.mxu0 0.0
      %425 = vmatprep.subr.mxu0 0.0
      %426 = vmatpush1.msra.mxu0 0.0
      %427 = vmatprep.subr.mxu0 0.0
      %428 = vmatpush1.msra.mxu0 0.0
      %429 = vmatprep.subr.mxu0 0.0
      %430 = vmatpush1.msra.mxu0 0.0
      %431 = vmatprep.subr.mxu0 0.0
      %432 = vmatpush1.msra.mxu0 0.0
      %433 = vmatprep.subr.mxu0 0.0
      %434 = vmatpush1.msra.mxu0 0.0
      %435 = vmatprep.subr.mxu0 0.0
      %436 = vmatpush1.msra.mxu0 0.0
      %437 = vmatprep.subr.mxu0 0.0
      %438 = vmatpush1.msra.mxu0 0.0
      %439 = vmatprep.subr.mxu0 0.0
      %440 = vmatpush1.msra.mxu0 0.0
      %441 = vmatprep.mubr.f32.mxu0 0.0
      %v442 = vand.u32 %v233, 4294901760
      %443 = vmatmul.mubr.f32.gmra.mrb[0].mxu0 %v442
      %v444 = vpop.f32.mrb[0].mxu0
      %v445 = vadd.f32 %v320, %v444
      %v446 = vpop.f32.mrb[0].mxu0
      %v447 = vadd.f32 %v322, %v446
      %448 = vmatprep.mubr.f32.mxu0 0.0
      %v449 = vand.u32 %v236, 4294901760
      %450 = vmatmul.mubr.f32.gmra.mrb[0].mxu0 %v449
      %v451 = vpop.f32.mrb[0].mxu0
      %v452 = vadd.f32 %v331, %v451
      %v453 = vpop.f32.mrb[0].mxu0
      %v454 = vadd.f32 %v333, %v453
      %455 = vmatprep.mubr.f32.mxu0 0.0
      %v456 = vand.u32 %v239, 4294901760
      %457 = vmatmul.mubr.f32.gmra.mrb[0].mxu0 %v456
      %v458 = vpop.f32.mrb[0].mxu0
      %v459 = vadd.f32 %v342, %v458
      %v460 = vpop.f32.mrb[0].mxu0
      %v461 = vadd.f32 %v344, %v460
      %462 = vmatprep.mubr.f32.mxu0 0.0
      %v463 = vand.u32 %v242, 4294901760
      %464 = vmatmul.mubr.f32.gmra.mrb[0].mxu0 %v463
      %v465 = vpop.f32.mrb[0].mxu0
      %v466 = vadd.f32 %v353, %v465
      %v467 = vpop.f32.mrb[0].mxu0
      %v468 = vadd.f32 %v355, %v467
      %469 = vdwg.mxu0
      %v470 = vand.u32 %v228, 4294901760
      %v471 = vsub.f32 %v228, %v470
      %472 = vmatprep.subr.mxu0 %v471
      %v473 = vand.u32 %v227, 4294901760
      %v474 = vsub.f32 %v227, %v473
      %475 = vmatpush1.msra.mxu0 %v474
      %v476 = vand.u32 %v230, 4294901760
      %v477 = vsub.f32 %v230, %v476
      %478 = vmatprep.subr.mxu0 %v477
      %v479 = vand.u32 %v229, 4294901760
      %v480 = vsub.f32 %v229, %v479
      %481 = vmatpush1.msra.mxu0 %v480
      %482 = vmatprep.subr.mxu0 0.0
      %483 = vmatpush1.msra.mxu0 0.0
      %484 = vmatprep.subr.mxu0 0.0
      %485 = vmatpush1.msra.mxu0 0.0
      %486 = vmatprep.subr.mxu0 0.0
      %487 = vmatpush1.msra.mxu0 0.0
      %488 = vmatprep.subr.mxu0 0.0
      %489 = vmatpush1.msra.mxu0 0.0
      %490 = vmatprep.subr.mxu0 0.0
      %491 = vmatpush1.msra.mxu0 0.0
      %492 = vmatprep.subr.mxu0 0.0
      %493 = vmatpush1.msra.mxu0 0.0
      %494 = vmatprep.subr.mxu0 0.0
      %495 = vmatpush1.msra.mxu0 0.0
      %496 = vmatprep.subr.mxu0 0.0
      %497 = vmatpush1.msra.mxu0 0.0
      %498 = vmatprep.subr.mxu0 0.0
      %499 = vmatpush1.msra.mxu0 0.0
      %500 = vmatprep.subr.mxu0 0.0
      %501 = vmatpush1.msra.mxu0 0.0
      %502 = vmatprep.subr.mxu0 0.0
      %503 = vmatpush1.msra.mxu0 0.0
      %504 = vmatprep.subr.mxu0 0.0
      %505 = vmatpush1.msra.mxu0 0.0
      %506 = vmatprep.subr.mxu0 0.0
      %507 = vmatpush1.msra.mxu0 0.0
      %508 = vmatprep.subr.mxu0 0.0
      %509 = vmatpush1.msra.mxu0 0.0
      %510 = vmatprep.subr.mxu0 0.0
      %511 = vmatpush1.msra.mxu0 0.0
      %512 = vmatprep.subr.mxu0 0.0
      %513 = vmatpush1.msra.mxu0 0.0
      %514 = vmatprep.subr.mxu0 0.0
      %515 = vmatpush1.msra.mxu0 0.0
      %516 = vmatprep.subr.mxu0 0.0
      %517 = vmatpush1.msra.mxu0 0.0
      %518 = vmatprep.subr.mxu0 0.0
      %519 = vmatpush1.msra.mxu0 0.0
      %520 = vmatprep.subr.mxu0 0.0
      %521 = vmatpush1.msra.mxu0 0.0
      %522 = vmatprep.subr.mxu0 0.0
      %523 = vmatpush1.msra.mxu0 0.0
      %524 = vmatprep.subr.mxu0 0.0
      %525 = vmatpush1.msra.mxu0 0.0
      %526 = vmatprep.subr.mxu0 0.0
      %527 = vmatpush1.msra.mxu0 0.0
      %528 = vmatprep.subr.mxu0 0.0
      %529 = vmatpush1.msra.mxu0 0.0
      %530 = vmatprep.subr.mxu0 0.0
      %531 = vmatpush1.msra.mxu0 0.0
      %532 = vmatprep.subr.mxu0 0.0
      %533 = vmatpush1.msra.mxu0 0.0
      %534 = vmatprep.subr.mxu0 0.0
      %535 = vmatpush1.msra.mxu0 0.0
      %536 = vmatprep.subr.mxu0 0.0
      %537 = vmatpush1.msra.mxu0 0.0
      %538 = vmatprep.subr.mxu0 0.0
      %539 = vmatpush1.msra.mxu0 0.0
      %540 = vmatprep.subr.mxu0 0.0
      %541 = vmatpush1.msra.mxu0 0.0
      %542 = vmatprep.mubr.f32.mxu0 0.0
      %v543 = vand.u32 %v233, 4294901760
      %v544 = vsub.f32 %v233, %v543
      %545 = vmatmul.mubr.f32.gmra.mrb[0].mxu0 %v544
      %v546 = vpop.f32.mrb[0].mxu0
      %v547 = vadd.f32 %v445, %v546
      %v548 = vpop.f32.mrb[0].mxu0
      %v549 = vadd.f32 %v447, %v548
      %550 = vmatprep.mubr.f32.mxu0 0.0
      %v551 = vand.u32 %v236, 4294901760
      %v552 = vsub.f32 %v236, %v551
      %553 = vmatmul.mubr.f32.gmra.mrb[0].mxu0 %v552
      %v554 = vpop.f32.mrb[0].mxu0
      %v555 = vadd.f32 %v452, %v554
      %v556 = vpop.f32.mrb[0].mxu0
      %v557 = vadd.f32 %v454, %v556
      %558 = vmatprep.mubr.f32.mxu0 0.0
      %v559 = vand.u32 %v239, 4294901760
      %v560 = vsub.f32 %v239, %v559
      %561 = vmatmul.mubr.f32.gmra.mrb[0].mxu0 %v560
      %v562 = vpop.f32.mrb[0].mxu0
      %v563 = vadd.f32 %v459, %v562
      %v564 = vpop.f32.mrb[0].mxu0
      %v565 = vadd.f32 %v461, %v564
      %566 = vmatprep.mubr.f32.mxu0 0.0
      %v567 = vand.u32 %v242, 4294901760
      %v568 = vsub.f32 %v242, %v567
      %569 = vmatmul.mubr.f32.gmra.mrb[0].mxu0 %v568
      %v570 = vpop.f32.mrb[0].mxu0
      %v571 = vadd.f32 %v466, %v570
      %v572 = vpop.f32.mrb[0].mxu0
      %v573 = vadd.f32 %v468, %v572
      %574 = vdwg.mxu0
      %v575 = vand.u32 %v228, 4294901760
      %576 = vmatprep.subr.mxu0 %v575
      %v577 = vand.u32 %v227, 4294901760
      %578 = vmatpush1.msra.mxu0 %v577
      %v579 = vand.u32 %v230, 4294901760
      %580 = vmatprep.subr.mxu0 %v579
      %v581 = vand.u32 %v229, 4294901760
      %582 = vmatpush1.msra.mxu0 %v581
      %583 = vmatprep.subr.mxu0 0.0
      %584 = vmatpush1.msra.mxu0 0.0
      %585 = vmatprep.subr.mxu0 0.0
      %586 = vmatpush1.msra.mxu0 0.0
      %587 = vmatprep.subr.mxu0 0.0
      %588 = vmatpush1.msra.mxu0 0.0
      %589 = vmatprep.subr.mxu0 0.0
      %590 = vmatpush1.msra.mxu0 0.0
      %591 = vmatprep.subr.mxu0 0.0
      %592 = vmatpush1.msra.mxu0 0.0
      %593 = vmatprep.subr.mxu0 0.0
      %594 = vmatpush1.msra.mxu0 0.0
      %595 = vmatprep.subr.mxu0 0.0
      %596 = vmatpush1.msra.mxu0 0.0
      %597 = vmatprep.subr.mxu0 0.0
      %598 = vmatpush1.msra.mxu0 0.0
      %599 = vmatprep.subr.mxu0 0.0
      %600 = vmatpush1.msra.mxu0 0.0
      %601 = vmatprep.subr.mxu0 0.0
      %602 = vmatpush1.msra.mxu0 0.0
      %603 = vmatprep.subr.mxu0 0.0
      %604 = vmatpush1.msra.mxu0 0.0
      %605 = vmatprep.subr.mxu0 0.0
      %606 = vmatpush1.msra.mxu0 0.0
      %607 = vmatprep.subr.mxu0 0.0
      %608 = vmatpush1.msra.mxu0 0.0
      %609 = vmatprep.subr.mxu0 0.0
      %610 = vmatpush1.msra.mxu0 0.0
      %611 = vmatprep.subr.mxu0 0.0
      %612 = vmatpush1.msra.mxu0 0.0
      %613 = vmatprep.subr.mxu0 0.0
      %614 = vmatpush1.msra.mxu0 0.0
      %615 = vmatprep.subr.mxu0 0.0
      %616 = vmatpush1.msra.mxu0 0.0
      %617 = vmatprep.subr.mxu0 0.0
      %618 = vmatpush1.msra.mxu0 0.0
      %619 = vmatprep.subr.mxu0 0.0
      %620 = vmatpush1.msra.mxu0 0.0
      %621 = vmatprep.subr.mxu0 0.0
      %622 = vmatpush1.msra.mxu0 0.0
      %623 = vmatprep.subr.mxu0 0.0
      %624 = vmatpush1.msra.mxu0 0.0
      %625 = vmatprep.subr.mxu0 0.0
      %626 = vmatpush1.msra.mxu0 0.0
      %627 = vmatprep.subr.mxu0 0.0
      %628 = vmatpush1.msra.mxu0 0.0
      %629 = vmatprep.subr.mxu0 0.0
      %630 = vmatpush1.msra.mxu0 0.0
      %631 = vmatprep.subr.mxu0 0.0
      %632 = vmatpush1.msra.mxu0 0.0
      %633 = vmatprep.subr.mxu0 0.0
      %634 = vmatpush1.msra.mxu0 0.0
      %635 = vmatprep.subr.mxu0 0.0
      %636 = vmatpush1.msra.mxu0 0.0
      %637 = vmatprep.subr.mxu0 0.0
      %638 = vmatpush1.msra.mxu0 0.0
      %639 = vmatprep.subr.mxu0 0.0
      %640 = vmatpush1.msra.mxu0 0.0
      %641 = vmatprep.subr.mxu0 0.0
      %642 = vmatpush1.msra.mxu0 0.0
      %643 = vmatprep.mubr.f32.mxu0 0.0
      %v644 = vand.u32 %v233, 4294901760
      %v645 = vsub.f32 %v233, %v644
      %v646 = vand.u32 %v645, 4294901760
      %647 = vmatmul.mubr.f32.gmra.mrb[0].mxu0 %v646
      %v648 = vpop.f32.mrb[0].mxu0
      %v649 = vadd.f32 %v547, %v648
      %v650 = vpop.f32.mrb[0].mxu0
      %v651 = vadd.f32 %v549, %v650
      %652 = vmatprep.mubr.f32.mxu0 0.0
      %v653 = vand.u32 %v236, 4294901760
      %v654 = vsub.f32 %v236, %v653
      %v655 = vand.u32 %v654, 4294901760
      %656 = vmatmul.mubr.f32.gmra.mrb[0].mxu0 %v655
      %v657 = vpop.f32.mrb[0].mxu0
      %v658 = vadd.f32 %v555, %v657
      %v659 = vpop.f32.mrb[0].mxu0
      %v660 = vadd.f32 %v557, %v659
      %661 = vmatprep.mubr.f32.mxu0 0.0
      %v662 = vand.u32 %v239, 4294901760
      %v663 = vsub.f32 %v239, %v662
      %v664 = vand.u32 %v663, 4294901760
      %665 = vmatmul.mubr.f32.gmra.mrb[0].mxu0 %v664
      %v666 = vpop.f32.mrb[0].mxu0
      %v667 = vadd.f32 %v563, %v666
      %v668 = vpop.f32.mrb[0].mxu0
      %v669 = vadd.f32 %v565, %v668
      %670 = vmatprep.mubr.f32.mxu0 0.0
      %v671 = vand.u32 %v242, 4294901760
      %v672 = vsub.f32 %v242, %v671
      %v673 = vand.u32 %v672, 4294901760
      %674 = vmatmul.mubr.f32.gmra.mrb[0].mxu0 %v673
      %v675 = vpop.f32.mrb[0].mxu0
      %v676 = vadd.f32 %v571, %v675
      %v677 = vpop.f32.mrb[0].mxu0
      %v678 = vadd.f32 %v573, %v677
      %679 = vdwg.mxu0
      %v680 = vand.u32 %v228, 4294901760
      %v681 = vsub.f32 %v228, %v680
      %v682 = vand.u32 %v681, 4294901760
      %683 = vmatprep.subr.mxu0 %v682
      %v684 = vand.u32 %v227, 4294901760
      %v685 = vsub.f32 %v227, %v684
      %v686 = vand.u32 %v685, 4294901760
      %687 = vmatpush1.msra.mxu0 %v686
      %v688 = vand.u32 %v230, 4294901760
      %v689 = vsub.f32 %v230, %v688
      %v690 = vand.u32 %v689, 4294901760
      %691 = vmatprep.subr.mxu0 %v690
      %v692 = vand.u32 %v229, 4294901760
      %v693 = vsub.f32 %v229, %v692
      %v694 = vand.u32 %v693, 4294901760
      %695 = vmatpush1.msra.mxu0 %v694
      %696 = vmatprep.subr.mxu0 0.0
      %697 = vmatpush1.msra.mxu0 0.0
      %698 = vmatprep.subr.mxu0 0.0
      %699 = vmatpush1.msra.mxu0 0.0
      %700 = vmatprep.subr.mxu0 0.0
      %701 = vmatpush1.msra.mxu0 0.0
      %702 = vmatprep.subr.mxu0 0.0
      %703 = vmatpush1.msra.mxu0 0.0
      %704 = vmatprep.subr.mxu0 0.0
      %705 = vmatpush1.msra.mxu0 0.0
      %706 = vmatprep.subr.mxu0 0.0
      %707 = vmatpush1.msra.mxu0 0.0
      %708 = vmatprep.subr.mxu0 0.0
      %709 = vmatpush1.msra.mxu0 0.0
      %710 = vmatprep.subr.mxu0 0.0
      %711 = vmatpush1.msra.mxu0 0.0
      %712 = vmatprep.subr.mxu0 0.0
      %713 = vmatpush1.msra.mxu0 0.0
      %714 = vmatprep.subr.mxu0 0.0
      %715 = vmatpush1.msra.mxu0 0.0
      %716 = vmatprep.subr.mxu0 0.0
      %717 = vmatpush1.msra.mxu0 0.0
      %718 = vmatprep.subr.mxu0 0.0
      %719 = vmatpush1.msra.mxu0 0.0
      %720 = vmatprep.subr.mxu0 0.0
      %721 = vmatpush1.msra.mxu0 0.0
      %722 = vmatprep.subr.mxu0 0.0
      %723 = vmatpush1.msra.mxu0 0.0
      %724 = vmatprep.subr.mxu0 0.0
      %725 = vmatpush1.msra.mxu0 0.0
      %726 = vmatprep.subr.mxu0 0.0
      %727 = vmatpush1.msra.mxu0 0.0
      %728 = vmatprep.subr.mxu0 0.0
      %729 = vmatpush1.msra.mxu0 0.0
      %730 = vmatprep.subr.mxu0 0.0
      %731 = vmatpush1.msra.mxu0 0.0
      %732 = vmatprep.subr.mxu0 0.0
      %733 = vmatpush1.msra.mxu0 0.0
      %734 = vmatprep.subr.mxu0 0.0
      %735 = vmatpush1.msra.mxu0 0.0
      %736 = vmatprep.subr.mxu0 0.0
      %737 = vmatpush1.msra.mxu0 0.0
      %738 = vmatprep.subr.mxu0 0.0
      %739 = vmatpush1.msra.mxu0 0.0
      %740 = vmatprep.subr.mxu0 0.0
      %741 = vmatpush1.msra.mxu0 0.0
      %742 = vmatprep.subr.mxu0 0.0
      %743 = vmatpush1.msra.mxu0 0.0
      %744 = vmatprep.subr.mxu0 0.0
      %745 = vmatpush1.msra.mxu0 0.0
      %746 = vmatprep.subr.mxu0 0.0
      %747 = vmatpush1.msra.mxu0 0.0
      %748 = vmatprep.subr.mxu0 0.0
      %749 = vmatpush1.msra.mxu0 0.0
      %750 = vmatprep.subr.mxu0 0.0
      %751 = vmatpush1.msra.mxu0 0.0
      %752 = vmatprep.subr.mxu0 0.0
      %753 = vmatpush1.msra.mxu0 0.0
      %754 = vmatprep.subr.mxu0 0.0
      %755 = vmatpush1.msra.mxu0 0.0
      %756 = vmatprep.mubr.f32.mxu0 0.0
      %v757 = vand.u32 %v233, 4294901760
      %758 = vmatmul.mubr.f32.gmra.mrb[0].mxu0 %v757
      %v759 = vpop.f32.mrb[0].mxu0
      %v760 = vadd.f32 %v649, %v759
      %v761 = vpop.f32.mrb[0].mxu0
      %v762 = vadd.f32 %v651, %v761
      %763 = vmatprep.mubr.f32.mxu0 0.0
      %v764 = vand.u32 %v236, 4294901760
      %765 = vmatmul.mubr.f32.gmra.mrb[0].mxu0 %v764
      %v766 = vpop.f32.mrb[0].mxu0
      %v767 = vadd.f32 %v658, %v766
      %v768 = vpop.f32.mrb[0].mxu0
      %v769 = vadd.f32 %v660, %v768
      %770 = vmatprep.mubr.f32.mxu0 0.0
      %v771 = vand.u32 %v239, 4294901760
      %772 = vmatmul.mubr.f32.gmra.mrb[0].mxu0 %v771
      %v773 = vpop.f32.mrb[0].mxu0
      %v774 = vadd.f32 %v667, %v773
      %v775 = vpop.f32.mrb[0].mxu0
      %v776 = vadd.f32 %v669, %v775
      %777 = vmatprep.mubr.f32.mxu0 0.0
      %v778 = vand.u32 %v242, 4294901760
      %779 = vmatmul.mubr.f32.gmra.mrb[0].mxu0 %v778
      %v780 = vpop.f32.mrb[0].mxu0
      %v781 = vadd.f32 %v676, %v780
      %v782 = vpop.f32.mrb[0].mxu0
      %v783 = vadd.f32 %v678, %v782
      %784 = vdwg.mxu0
      %v785 = vand.u32 %v228, 4294901760
      %786 = vmatprep.subr.mxu0 %v785
      %v787 = vand.u32 %v227, 4294901760
      %788 = vmatpush1.msra.mxu0 %v787
      %v789 = vand.u32 %v230, 4294901760
      %790 = vmatprep.subr.mxu0 %v789
      %v791 = vand.u32 %v229, 4294901760
      %792 = vmatpush1.msra.mxu0 %v791
      %793 = vmatprep.subr.mxu0 0.0
      %794 = vmatpush1.msra.mxu0 0.0
      %795 = vmatprep.subr.mxu0 0.0
      %796 = vmatpush1.msra.mxu0 0.0
      %797 = vmatprep.subr.mxu0 0.0
      %798 = vmatpush1.msra.mxu0 0.0
      %799 = vmatprep.subr.mxu0 0.0
      %800 = vmatpush1.msra.mxu0 0.0
      %801 = vmatprep.subr.mxu0 0.0
      %802 = vmatpush1.msra.mxu0 0.0
      %803 = vmatprep.subr.mxu0 0.0
      %804 = vmatpush1.msra.mxu0 0.0
      %805 = vmatprep.subr.mxu0 0.0
      %806 = vmatpush1.msra.mxu0 0.0
      %807 = vmatprep.subr.mxu0 0.0
      %808 = vmatpush1.msra.mxu0 0.0
      %809 = vmatprep.subr.mxu0 0.0
      %810 = vmatpush1.msra.mxu0 0.0
      %811 = vmatprep.subr.mxu0 0.0
      %812 = vmatpush1.msra.mxu0 0.0
      %813 = vmatprep.subr.mxu0 0.0
      %814 = vmatpush1.msra.mxu0 0.0
      %815 = vmatprep.subr.mxu0 0.0
      %816 = vmatpush1.msra.mxu0 0.0
      %817 = vmatprep.subr.mxu0 0.0
      %818 = vmatpush1.msra.mxu0 0.0
      %819 = vmatprep.subr.mxu0 0.0
      %820 = vmatpush1.msra.mxu0 0.0
      %821 = vmatprep.subr.mxu0 0.0
      %822 = vmatpush1.msra.mxu0 0.0
      %823 = vmatprep.subr.mxu0 0.0
      %824 = vmatpush1.msra.mxu0 0.0
      %825 = vmatprep.subr.mxu0 0.0
      %826 = vmatpush1.msra.mxu0 0.0
      %827 = vmatprep.subr.mxu0 0.0
      %828 = vmatpush1.msra.mxu0 0.0
      %829 = vmatprep.subr.mxu0 0.0
      %830 = vmatpush1.msra.mxu0 0.0
      %831 = vmatprep.subr.mxu0 0.0
      %832 = vmatpush1.msra.mxu0 0.0
      %833 = vmatprep.subr.mxu0 0.0
      %834 = vmatpush1.msra.mxu0 0.0
      %835 = vmatprep.subr.mxu0 0.0
      %836 = vmatpush1.msra.mxu0 0.0
      %837 = vmatprep.subr.mxu0 0.0
      %838 = vmatpush1.msra.mxu0 0.0
      %839 = vmatprep.subr.mxu0 0.0
      %840 = vmatpush1.msra.mxu0 0.0
      %841 = vmatprep.subr.mxu0 0.0
      %842 = vmatpush1.msra.mxu0 0.0
      %843 = vmatprep.subr.mxu0 0.0
      %844 = vmatpush1.msra.mxu0 0.0
      %845 = vmatprep.subr.mxu0 0.0
      %846 = vmatpush1.msra.mxu0 0.0
      %847 = vmatprep.subr.mxu0 0.0
      %848 = vmatpush1.msra.mxu0 0.0
      %849 = vmatprep.subr.mxu0 0.0
      %850 = vmatpush1.msra.mxu0 0.0
      %851 = vmatprep.subr.mxu0 0.0
      %852 = vmatpush1.msra.mxu0 0.0
      %853 = vmatprep.mubr.f32.mxu0 0.0
      %v854 = vand.u32 %v233, 4294901760
      %855 = vmatmul.mubr.f32.gmra.mrb[0].mxu0 %v854
      %v856 = vpop.f32.mrb[0].mxu0
      %v857 = vadd.f32 %v760, %v856
      %v858 = vpop.f32.mrb[0].mxu0
      %v859 = vadd.f32 %v762, %v858
      %860 = vmatprep.mubr.f32.mxu0 0.0
      %v861 = vand.u32 %v236, 4294901760
      %862 = vmatmul.mubr.f32.gmra.mrb[0].mxu0 %v861
      %v863 = vpop.f32.mrb[0].mxu0
      %v864 = vadd.f32 %v767, %v863
      %v865 = vpop.f32.mrb[0].mxu0
      %v866 = vadd.f32 %v769, %v865
      %867 = vmatprep.mubr.f32.mxu0 0.0
      %v868 = vand.u32 %v239, 4294901760
      %869 = vmatmul.mubr.f32.gmra.mrb[0].mxu0 %v868
      %v870 = vpop.f32.mrb[0].mxu0
      %v871 = vadd.f32 %v774, %v870
      %v872 = vpop.f32.mrb[0].mxu0
      %v873 = vadd.f32 %v776, %v872
      %874 = vmatprep.mubr.f32.mxu0 0.0
      %v875 = vand.u32 %v242, 4294901760
      %876 = vmatmul.mubr.f32.gmra.mrb[0].mxu0 %v875
      %v877 = vpop.f32.mrb[0].mxu0
      %v878 = vadd.f32 %v781, %v877
      %v879 = vpop.f32.mrb[0].mxu0
      %v880 = vadd.f32 %v783, %v879
      %881 = vdwg.mxu0
      %882 = vst [vmem:[%s220] sm:$0xff] %v857
      %883 = vst [vmem:[%s220 + $0x8] sm:$0xff] %v859
      %884 = vst [vmem:[%s220 + $0x10] sm:$0xff] %v864
      %885 = vst [vmem:[%s220 + $0x18] sm:$0xff] %v866
      %886 = vst [vmem:[%s220 + $0x20] sm:$0xff] %v871
      %887 = vst [vmem:[%s220 + $0x28] sm:$0xff] %v873
      %888 = vst [vmem:[%s220 + $0x30] sm:$0xff] %v878
      %889 = vst [vmem:[%s220 + $0x38] sm:$0xff] %v880
      %s890 = smul.u32 4, %s18
      %s891 = smul.u32 2, %s19
      %p892 = scmp.lt.s32.totalorder %s20, 1
      %s893 = scalar_select %p892, %s20, 1
      %p894 = scmp.lt.s32.totalorder %s890, 7
      %s895 = scalar_select %p894, %s890, 7
      %p896 = scmp.lt.s32.totalorder %s891, 1
      %s897 = scalar_select %p896, %s891, 1
      %s898 = smul.addr %s895, 2
      %s899 = sadd.s32 %s897, %s898
      %s900 = smul.addr %s893, 16
      %s901 = sadd.s32 %s899, %s900
      %s902 = smul.addr %s901, 8
      %s903 = scalar_lea.vmem %s2, %s902
      // Predicated region
      $region29: #{position_embedding_learned.1} parent=27 // pred_check
        %p904 = pneg %p108
      $region30: #{position_embedding_learned.1} parent=27 // pred_check_branch
        %906 = sbr.rel (%p904) target = $region32
      $region31: #{position_embedding_learned.1} parent=27 // pred_region
        %s907 = smul.u32 4, %s18
        %s908 = smul.u32 2, %s19
      $region32: #{position_embedding_learned.1} parent=27 // pred_fallthru
        _
    $region28: #{position_embedding_learned.1} parent=5 // pred_fallthru
      _
    %p909 = scmp.le.s32.totalorder 2, %s8
    // Predicated region
    $region33: #{position_embedding_learned.1} parent=5 // pred_check
      %p910 = pneg %p909
    $region34: #{position_embedding_learned.1} parent=5 // pred_check_branch
      %912 = sbr.rel (%p910) target = $region36
    $region35: #{position_embedding_learned.1} parent=5 // pred_region
      %s913 = ssub.s32 %s8, 2
      // Predicated region
      $region37: #{position_embedding_learned.1} parent=35 // pred_check
        %p914 = pneg %p114
      $region38: #{position_embedding_learned.1} parent=35 // pred_check_branch
        %916 = sbr.rel (%p914) target = $region40
      $region39: #{position_embedding_learned.1} parent=35 // pred_region
        %s917 = smul.u32 4, %s21
        %s918 = smul.u32 2, %s22
        %p919 = scmp.lt.s32.totalorder %s23, 1
        %s920 = scalar_select %p919, %s23, 1
        %p921 = scmp.lt.s32.totalorder %s917, 7
        %s922 = scalar_select %p921, %s917, 7
        %p923 = scmp.lt.s32.totalorder %s918, 1
        %s924 = scalar_select %p923, %s918, 1
        %s925 = smul.addr %s922, 2
        %s926 = sadd.s32 %s924, %s925
        %s927 = smul.addr %s920, 16
        %s928 = sadd.s32 %s926, %s927
        %s929 = smul.addr %s928, 8
        %s930 = scalar_lea.vmem %s2, %s929
      $region40: #{position_embedding_learned.1} parent=35 // pred_fallthru
        _
    $region36: #{position_embedding_learned.1} parent=5 // pred_fallthru
      _
  $region6: #{position_embedding_learned.1} parent=0 // loop_footer
    %s12 = sadd.s32 1, %s8
  $region7: #{position_embedding_learned.1} parent=0 // loop_footer_branch
    %7 = sbr.rel target = $region3
  $region8: #{position_embedding_learned.1} parent=0 // loop_exit
    _

</llo_original>
